<compile_context>
chip_gen: v5e
topology: v5e:2x2
jax: 0.10.0
libtpu: 0.0.40
codegen_flags: <defaults>
</compile_context>

<pallas_src>
import functools

import jax
import jax.numpy as jnp
import numpy as np
from jax import lax
from jax.experimental import pallas as pl
from jax.experimental.pallas import tpu as pltpu


def _round_up(x, m):
    return ((x + m - 1) // m) * m


# ----------------------------------------------------------------------------
# Pallas kernels
# ----------------------------------------------------------------------------
def lstm_kernel(x_ref, wih_ref, whh_ref, b_ref, y_ref, hn_ref, cn_ref,
                gx_ref, *, B, T):
    """One LSTM layer per grid step (grid=(L,), sequential/"arbitrary").

    x_ref  : (T*B, H)   time-major layer-0 input rows (resident across layers)
    wih_ref: (1, H, 4H) bf16 input->gates weights of current layer
    whh_ref: (1, H, 4H) bf16 hidden->gates weights of current layer
    b_ref  : (1, 1, 4H) f32 combined bias (bias_ih + bias_hh) of current layer
    y_ref  : (T*B, H)   output rows; resident working buffer across layers
    hn_ref : (1, B, H)  final hidden state of current layer
    cn_ref : (1, B, H)  final cell state of current layer
    gx_ref : (T*B, 4H)  f32 scratch: precomputed input projection (+bias)
    """
    H = x_ref.shape[-1]
    l = pl.program_id(0)

    # Hoisted once per layer (outside the time loop): weight up-cast + bias.
    wih = wih_ref[0].astype(jnp.float32)        # (H, 4H)
    whh = whh_ref[0].astype(jnp.float32)        # (H, 4H)
    b = b_ref[0]                                # (1, 4H)

    # Input projection for ALL timesteps as one MXU-shaped matmul, bias folded in.
    # Layer 0 reads the sequence input; deeper layers read the previous layer's
    # hidden sequence already sitting in the resident y output block.
    @pl.when(l == 0)
    def _():
        gx_ref[...] = jnp.dot(x_ref[...], wih,
                              preferred_element_type=jnp.float32) + b

    @pl.when(l > 0)
    def _():
        gx_ref[...] = jnp.dot(y_ref[...], wih,
                              preferred_element_type=jnp.float32) + b

    def step(t, carry):
        h, c = carry
        r0 = pl.multiple_of(t * B, B)                           # sublane-aligned slab
        gates = gx_ref[pl.ds(r0, B), :] + jnp.dot(
            h, whh, preferred_element_type=jnp.float32)         # (B, 4H)
        # PyTorch gate order (i, f, g, o). For production keep H % 128 == 0 so these
        # slices are lane-aligned.
        i_g = jax.nn.sigmoid(gates[:, 0 * H:1 * H])
        f_g = jax.nn.sigmoid(gates[:, 1 * H:2 * H])
        g_g = jnp.tanh(gates[:, 2 * H:3 * H])
        o_g = jax.nn.sigmoid(gates[:, 3 * H:4 * H])
        c_new = f_g * c + i_g * g_g
        h_new = o_g * jnp.tanh(c_new)
        y_ref[pl.ds(r0, B), :] = h_new                          # full (B, H) slab store
        return (h_new, c_new)

    # Zero initial state created in-register (no HBM->VMEM DMA of zeros).
    h0 = jnp.zeros((B, H), jnp.float32)
    c0 = jnp.zeros((B, H), jnp.float32)
    h_fin, c_fin = lax.fori_loop(0, T, step, (h0, c0))
    hn_ref[0] = h_fin
    cn_ref[0] = c_fin


def lm_head_kernel(x_ref, gamma_ref, beta_ref, w_ref, b_ref, o_ref):
    """LayerNorm (eps=1e-5) + Linear, tiled over (N, V).

    x_ref: (TILE_N, H) f32, w_ref: (H, TILE_V) bf16, o_ref: (TILE_N, TILE_V) f32.
    """
    x = x_ref[...]
    mean = jnp.mean(x, axis=-1, keepdims=True)
    var = jnp.mean(jnp.square(x - mean), axis=-1, keepdims=True)
    xn = (x - mean) * lax.rsqrt(var + 1e-5)
    y = xn * gamma_ref[...] + beta_ref[...]
    o_ref[...] = (jnp.dot(y.astype(w_ref.dtype), w_ref[...],
                          preferred_element_type=jnp.float32)
                  + b_ref[...])


# ----------------------------------------------------------------------------
# Wrappers
# ----------------------------------------------------------------------------
def run_lstm(x_tm, wih_t, whh_t, bias, *, B, T):
    """x_tm: (T*B, H) time-major rows. Returns y_tm (T*B,H), h_n (L,B,H), c_n (L,B,H)."""
    H = x_tm.shape[-1]
    L = wih_t.shape[0]
    kernel = functools.partial(lstm_kernel, B=B, T=T)
    return pl.pallas_call(
        kernel,
        out_shape=(
            jax.ShapeDtypeStruct((T * B, H), jnp.float32),
            jax.ShapeDtypeStruct((L, B, H), jnp.float32),
            jax.ShapeDtypeStruct((L, B, H), jnp.float32),
        ),
        grid_spec=pltpu.PrefetchScalarGridSpec(
            num_scalar_prefetch=0,
            grid=(L,),
            in_specs=[
                pl.BlockSpec((T * B, H), lambda l: (0, 0)),          # resident input
                pl.BlockSpec((1, H, 4 * H), lambda l: (l, 0, 0)),    # per-layer W_ih
                pl.BlockSpec((1, H, 4 * H), lambda l: (l, 0, 0)),    # per-layer W_hh
                pl.BlockSpec((1, 1, 4 * H), lambda l: (l, 0, 0)),    # per-layer bias
            ],
            out_specs=[
                pl.BlockSpec((T * B, H), lambda l: (0, 0)),          # resident y buffer
                pl.BlockSpec((1, B, H), lambda l: (l, 0, 0)),
                pl.BlockSpec((1, B, H), lambda l: (l, 0, 0)),
            ],
            scratch_shapes=[pltpu.VMEM((T * B, 4 * H), jnp.float32)],
        ),
        compiler_params=pltpu.CompilerParams(
            dimension_semantics=("arbitrary",)),
    )(x_tm, wih_t, whh_t, bias)


def run_lm_head(x2d, gamma, beta, w_t, b):
    """x2d: (N, H) f32, w_t: (H, V) bf16, b: (1, V) f32 -> logits (N, V) f32."""
    N, H = x2d.shape
    V = w_t.shape[1]
    TILE_N = 256 if N >= 256 else _round_up(N, 8)
    TILE_V = 512 if V >= 512 else _round_up(V, 128)
    N_pad = _round_up(N, TILE_N)
    V_pad = _round_up(V, TILE_V)

    x_p = jnp.pad(x2d, ((0, N_pad - N), (0, 0))) if N_pad != N else x2d
    w_p = jnp.pad(w_t, ((0, 0), (0, V_pad - V))) if V_pad != V else w_t
    b_p = jnp.pad(b, ((0, 0), (0, V_pad - V))) if V_pad != V else b

    out = pl.pallas_call(
        lm_head_kernel,
        out_shape=jax.ShapeDtypeStruct((N_pad, V_pad), jnp.float32),
        grid_spec=pltpu.PrefetchScalarGridSpec(
            num_scalar_prefetch=0,
            grid=(N_pad // TILE_N, V_pad // TILE_V),
            in_specs=[
                pl.BlockSpec((TILE_N, H), lambda i, j: (i, 0)),
                pl.BlockSpec((1, H), lambda i, j: (0, 0)),
                pl.BlockSpec((1, H), lambda i, j: (0, 0)),
                pl.BlockSpec((H, TILE_V), lambda i, j: (0, j)),
                pl.BlockSpec((1, TILE_V), lambda i, j: (0, j)),
            ],
            out_specs=pl.BlockSpec((TILE_N, TILE_V), lambda i, j: (i, j)),
        ),
        compiler_params=pltpu.CompilerParams(
            dimension_semantics=("parallel", "parallel")),
    )(x_p, gamma, beta, w_p, b_p)
    return out[:N, :V]


@jax.jit
def language_model_forward(idx, params):
    """Equivalent of LanguageModel.forward(idx, targets=None, hidden=None)."""
    B, T = idx.shape
    H = params["tok_emb"].shape[1]
    V = params["tok_emb"].shape[0]

    # Embedding gathers (glue, plain JAX). Assumes T <= context_size (as in PyTorch).
    tok_emb = params["tok_emb"][idx]                      # (B, T, H)
    pos_emb = params["pos_emb"][jnp.arange(T)]            # (T, H)
    x = tok_emb + pos_emb[None, :, :]                     # (B, T, H)

    # Pad batch (sublane axis) to a multiple of 8 for full-width per-step slabs.
    B_pad = _round_up(B, 8)
    if B_pad != B:
        x = jnp.pad(x, ((0, B_pad - B), (0, 0), (0, 0)))
    # Time-major rows: timestep t occupies contiguous rows [t*B_pad, (t+1)*B_pad).
    x_tm = jnp.transpose(x, (1, 0, 2)).reshape(T * B_pad, H)

    y_tm, h_n, c_n = run_lstm(x_tm, params["wih_t"], params["whh_t"],
                              params["lstm_bias"], B=B_pad, T=T)
    h_n = h_n[:, :B]
    c_n = c_n[:, :B]

    # Strip batch padding before the head; LayerNorm/Linear are row-wise so row
    # order (time-major) does not matter.
    y2d = y_tm.reshape(T, B_pad, H)[:, :B, :].reshape(T * B, H)
    logits2d = run_lm_head(y2d, params["ln_gamma"], params["ln_beta"],
                           params["head_w_t"], params["head_b"])
    logits = jnp.transpose(logits2d.reshape(T, B, V), (1, 0, 2))

    loss = None
    # TODO(synk): targets/cross-entropy path and an externally supplied `hidden`
    # initial state are not implemented (forward(idx) path only); clip_grad_norm_
    # only touches .grad buffers, so it is a no-op in this forward-only kernel.
    return logits, (h_n, c_n), loss


# ----------------------------------------------------------------------------
# Pure-JAX reference (for correctness check; mirrors the kernel's dtype choices)
# ----------------------------------------------------------------------------
def forward_ref(idx, params):
    B, T = idx.shape
    H = params["tok_emb"].shape[1]
    L = params["wih_t"].shape[0]
    y = params["tok_emb"][idx] + params["pos_emb"][jnp.arange(T)][None]
    hs, cs = [], []
    for l in range(L):
        wih = params["wih_t"][l].astype(jnp.float32)
        whh = params["whh_t"][l].astype(jnp.float32)
        b = params["lstm_bias"][l, 0]

        def step(carry, x_t):
            h, c = carry
            gates = (jnp.dot(x_t, wih, preferred_element_type=jnp.float32) + b
                     + jnp.dot(h, whh, preferred_element_type=jnp.float32))
            i_g = jax.nn.sigmoid(gates[:, 0 * H:1 * H])
            f_g = jax.nn.sigmoid(gates[:, 1 * H:2 * H])
            g_g = jnp.tanh(gates[:, 2 * H:3 * H])
            o_g = jax.nn.sigmoid(gates[:, 3 * H:4 * H])
            c_new = f_g * c + i_g * g_g
            h_new = o_g * jnp.tanh(c_new)
            return (h_new, c_new), h_new

        init = (jnp.zeros((B, H), jnp.float32), jnp.zeros((B, H), jnp.float32))
        (h_f, c_f), ys = lax.scan(step, init, jnp.swapaxes(y, 0, 1))
        y = jnp.swapaxes(ys, 0, 1)
        hs.append(h_f)
        cs.append(c_f)
    h_n = jnp.stack(hs)
    c_n = jnp.stack(cs)

    mean = jnp.mean(y, axis=-1, keepdims=True)
    var = jnp.mean(jnp.square(y - mean), axis=-1, keepdims=True)
    yn = (y - mean) * lax.rsqrt(var + 1e-5)
    yn = yn * params["ln_gamma"][0] + params["ln_beta"][0]
    logits = jnp.dot(yn.astype(jnp.bfloat16), params["head_w_t"],
                     preferred_element_type=jnp.float32) + params["head_b"][0]
    return logits, (h_n, c_n)


# ----------------------------------------------------------------------------
# Deterministic parameter construction
# ----------------------------------------------------------------------------
def make_params(key, vocab_size, n_embd, n_layer, context_size):
    H = n_embd
    ks = jax.random.split(key, 8)
    scale = 1.0 / np.sqrt(H)
    tok_emb = jax.random.normal(ks[0], (vocab_size, H), jnp.float32) * 0.02
    pos_emb = jax.random.normal(ks[1], (context_size, H), jnp.float32) * 0.02
    # PyTorch LSTM: weight_ih_l{k} (4H, H), weight_hh_l{k} (4H, H), two biases (4H,).
    w_ih = jax.random.uniform(ks[2], (n_layer, 4 * H, H), jnp.float32, -scale, scale)
    w_hh = jax.random.uniform(ks[3], (n_layer, 4 * H, H), jnp.float32, -scale, scale)
    b_ih = jax.random.uniform(ks[4], (n_layer, 4 * H), jnp.float32, -scale, scale)
    b_hh = jax.random.uniform(ks[5], (n_layer, 4 * H), jnp.float32, -scale, scale)
    head_w = jax.random.uniform(ks[6], (vocab_size, H), jnp.float32, -scale, scale)
    head_b = jax.random.uniform(ks[7], (vocab_size,), jnp.float32, -scale, scale)
    return {
        "tok_emb": tok_emb,
        "pos_emb": pos_emb,
        # bf16 storage halves weight DMA / VMEM residency; kernel up-casts to f32.
        "wih_t": jnp.transpose(w_ih, (0, 2, 1)).astype(jnp.bfloat16),   # (L, H, 4H)
        "whh_t": jnp.transpose(w_hh, (0, 2, 1)).astype(jnp.bfloat16),   # (L, H, 4H)
        "lstm_bias": (b_ih + b_hh)[:, None, :],                          # (L, 1, 4H)
        "ln_gamma": jnp.ones((1, H), jnp.float32),
        "ln_beta": jnp.zeros((1, H), jnp.float32),
        "head_w_t": jnp.transpose(head_w).astype(jnp.bfloat16),          # (H, V) bf16 MXU
        "head_b": head_b[None, :],                                       # (1, V)
    }


if __name__ == "__main__":
    vocab_size = 64
    n_embd = 32
    n_layer = 2
    context_size = 16
    B, T = 2, 8

    key = jax.random.PRNGKey(0)
    k_param, k_idx = jax.random.split(key)
    params = make_params(k_param, vocab_size, n_embd, n_layer, context_size)
    idx = jax.random.randint(k_idx, (B, T), 0, vocab_size, dtype=jnp.int32)

    logits, (h_n, c_n), loss = language_model_forward(idx, params)
    jax.block_until_ready((logits, h_n, c_n))

    # Correctness check vs. pure-JAX reference (same weights / dtype choices).
    ref_logits, (ref_h, ref_c) = forward_ref(idx, params)
    np.testing.assert_allclose(np.asarray(h_n), np.asarray(ref_h),
                               rtol=1e-4, atol=1e-4)
    np.testing.assert_allclose(np.asarray(c_n), np.asarray(ref_c),
                               rtol=1e-4, atol=1e-4)
    # Head matmul runs in bf16 (f32 accumulation) on both sides -> slightly looser.
    np.testing.assert_allclose(np.asarray(logits), np.asarray(ref_logits),
                               rtol=5e-3, atol=5e-3)

    assert logits.shape == (B, T, vocab_size)
    assert h_n.shape == (n_layer, B, n_embd) and c_n.shape == (n_layer, B, n_embd)
    assert loss is None
    print("KERNEL_OK")
</pallas_src>

<mosaic_0001>
module attributes {stable_mosaic.version = 11 : i64} {
  func.func @lstm_kernel(%arg0: i32, %arg1: memref<64x32xf32, #tpu.memory_space<vmem>>, %arg2: memref<1x32x128xbf16, #tpu.memory_space<vmem>>, %arg3: memref<1x32x128xbf16, #tpu.memory_space<vmem>>, %arg4: memref<1x1x128xf32, #tpu.memory_space<vmem>>, %arg5: memref<64x32xf32, #tpu.memory_space<vmem>>, %arg6: memref<1x8x32xf32, #tpu.memory_space<vmem>>, %arg7: memref<1x8x32xf32, #tpu.memory_space<vmem>>, %arg8: memref<64x128xf32, #tpu.memory_space<vmem>>) attributes {dimension_semantics = [#tpu.dimension_semantics<arbitrary>], iteration_bounds = array<i64: 2>, scalar_prefetch = 0 : i64, scratch_operands = 1 : i64, tpu.core_type = #tpu.core_type<tc>, window_params = [{pipeline_mode = #tpu.pipeline_mode<synchronous>, transform_indices = @transform_0, window_bounds = array<i64: 64, 32>}, {transform_indices = @transform_1, window_bounds = array<i64: 1, 32, 128>}, {transform_indices = @transform_2, window_bounds = array<i64: 1, 32, 128>}, {transform_indices = @transform_3, window_bounds = array<i64: 1, 1, 128>}, {pipeline_mode = #tpu.pipeline_mode<synchronous>, transform_indices = @transform_4, window_bounds = array<i64: 64, 32>}, {transform_indices = @transform_5, window_bounds = array<i64: 1, 8, 32>}, {transform_indices = @transform_6, window_bounds = array<i64: 1, 8, 32>}]} {
    %c0 = arith.constant 0 : index
    %c0_0 = arith.constant 0 : index
    %c0_1 = arith.constant 0 : index
    %0 = vector.load %arg2[%c0, %c0_0, %c0_1] : memref<1x32x128xbf16, #tpu.memory_space<vmem>>, vector<1x32x128xbf16>
    %1 = vector.shape_cast %0 : vector<1x32x128xbf16> to vector<32x128xbf16>
    %2 = arith.extf %1 : vector<32x128xbf16> to vector<32x128xf32>
    %c0_2 = arith.constant 0 : index
    %c0_3 = arith.constant 0 : index
    %c0_4 = arith.constant 0 : index
    %3 = vector.load %arg3[%c0_2, %c0_3, %c0_4] : memref<1x32x128xbf16, #tpu.memory_space<vmem>>, vector<1x32x128xbf16>
    %4 = vector.shape_cast %3 : vector<1x32x128xbf16> to vector<32x128xbf16>
    %5 = arith.extf %4 : vector<32x128xbf16> to vector<32x128xf32>
    %c0_5 = arith.constant 0 : index
    %c0_6 = arith.constant 0 : index
    %c0_7 = arith.constant 0 : index
    %6 = vector.load %arg4[%c0_5, %c0_6, %c0_7] : memref<1x1x128xf32, #tpu.memory_space<vmem>>, vector<1x1x128xf32>
    %7 = vector.shape_cast %6 : vector<1x1x128xf32> to vector<1x128xf32>
    %c0_i32 = arith.constant 0 : i32
    %8 = arith.cmpi eq, %arg0, %c0_i32 : i32
    %9 = arith.extui %8 : i1 to i32
    %c0_i32_8 = arith.constant 0 : i32
    %10 = arith.cmpi ne, %9, %c0_i32_8 : i32
    scf.if %10 {
      %c0_20 = arith.constant 0 : index
      %c0_21 = arith.constant 0 : index
      %24 = vector.load %arg1[%c0_20, %c0_21] : memref<64x32xf32, #tpu.memory_space<vmem>>, vector<64x32xf32>
      %cst_22 = arith.constant dense<0.000000e+00> : vector<64x128xf32>
      %25 = tpu.matmul %24, %2, %cst_22 {dimension_numbers = #tpu.dot_dimension_numbers<[1], [0], [0], [1], [0, 0, 1, 1], [], []>} : vector<64x32xf32>, vector<32x128xf32>, vector<64x128xf32> -> vector<64x128xf32>
      %26 = vector.broadcast %7 : vector<1x128xf32> to vector<64x128xf32>
      %27 = arith.addf %25, %26 : vector<64x128xf32>
      %c0_23 = arith.constant 0 : index
      %c0_24 = arith.constant 0 : index
      %28 = vector.load %arg8[%c0_23, %c0_24] : memref<64x128xf32, #tpu.memory_space<vmem>>, vector<64x128xf32>
      tpu.vector_store %arg8[%c0_23, %c0_24], %27 {strides = array<i32>} : memref<64x128xf32, #tpu.memory_space<vmem>>, vector<64x128xf32>,
    } else {
    }
    %c0_i32_9 = arith.constant 0 : i32
    %11 = arith.cmpi sgt, %arg0, %c0_i32_9 : i32
    %12 = arith.extui %11 : i1 to i32
    %c0_i32_10 = arith.constant 0 : i32
    %13 = arith.cmpi ne, %12, %c0_i32_10 : i32
    scf.if %13 {
      %c0_20 = arith.constant 0 : index
      %c0_21 = arith.constant 0 : index
      %24 = vector.load %arg5[%c0_20, %c0_21] : memref<64x32xf32, #tpu.memory_space<vmem>>, vector<64x32xf32>
      %cst_22 = arith.constant dense<0.000000e+00> : vector<64x128xf32>
      %25 = tpu.matmul %24, %2, %cst_22 {dimension_numbers = #tpu.dot_dimension_numbers<[1], [0], [0], [1], [0, 0, 1, 1], [], []>} : vector<64x32xf32>, vector<32x128xf32>, vector<64x128xf32> -> vector<64x128xf32>
      %26 = vector.broadcast %7 : vector<1x128xf32> to vector<64x128xf32>
      %27 = arith.addf %25, %26 : vector<64x128xf32>
      %c0_23 = arith.constant 0 : index
      %c0_24 = arith.constant 0 : index
      %28 = vector.load %arg8[%c0_23, %c0_24] : memref<64x128xf32, #tpu.memory_space<vmem>>, vector<64x128xf32>
      tpu.vector_store %arg8[%c0_23, %c0_24], %27 {strides = array<i32>} : memref<64x128xf32, #tpu.memory_space<vmem>>, vector<64x128xf32>,
    } else {
    }
    %cst = arith.constant 0.000000e+00 : f32
    %14 = vector.broadcast %cst : f32 to vector<8x32xf32>
    %cst_11 = arith.constant 0.000000e+00 : f32
    %15 = vector.broadcast %cst_11 : f32 to vector<8x32xf32>
    %c0_i32_12 = arith.constant 0 : i32
    %c8_i32 = arith.constant 8 : i32
    %16 = arith.addi %c0_i32_12, %c8_i32 : i32
    %c1_i32 = arith.constant 1 : i32
    %17:2 = scf.for %arg9 = %c0_i32_12 to %16 step %c1_i32 iter_args(%arg10 = %14, %arg11 = %15) -> (vector<8x32xf32>, vector<8x32xf32>)  : i32 {
      %c8_i32_20 = arith.constant 8 : i32
      %24 = arith.muli %arg9, %c8_i32_20 : i32
      %25 = tpu.assume_multiple %24, 8 : i32
      %26 = arith.index_cast %25 : i32 to index
      %c0_21 = arith.constant 0 : index
      %27 = vector.load %arg8[%26, %c0_21] : memref<64x128xf32, #tpu.memory_space<vmem>>, vector<8x128xf32>
      %cst_22 = arith.constant dense<0.000000e+00> : vector<8x128xf32>
      %28 = tpu.matmul %arg10, %5, %cst_22 {dimension_numbers = #tpu.dot_dimension_numbers<[1], [0], [0], [1], [0, 0, 1, 1], [], []>} : vector<8x32xf32>, vector<32x128xf32>, vector<8x128xf32> -> vector<8x128xf32>
      %29 = arith.addf %27, %28 : vector<8x128xf32>
      %30 = vector.extract_strided_slice %29 {offsets = [0, 0], sizes = [8, 32], strides = [1, 1]} : vector<8x128xf32> to vector<8x32xf32>
      %31 = arith.negf %30 : vector<8x32xf32>
      %32 = math.exp %31 : vector<8x32xf32>
      %cst_23 = arith.constant 1.000000e+00 : f32
      %33 = vector.broadcast %cst_23 : f32 to vector<8x32xf32>
      %34 = arith.addf %33, %32 : vector<8x32xf32>
      %35 = arith.divf %33, %34 : vector<8x32xf32>
      %36 = vector.extract_strided_slice %29 {offsets = [0, 32], sizes = [8, 32], strides = [1, 1]} : vector<8x128xf32> to vector<8x32xf32>
      %37 = arith.negf %36 : vector<8x32xf32>
      %38 = math.exp %37 : vector<8x32xf32>
      %cst_24 = arith.constant 1.000000e+00 : f32
      %39 = vector.broadcast %cst_24 : f32 to vector<8x32xf32>
      %40 = arith.addf %39, %38 : vector<8x32xf32>
      %41 = arith.divf %39, %40 : vector<8x32xf32>
      %42 = vector.extract_strided_slice %29 {offsets = [0, 64], sizes = [8, 32], strides = [1, 1]} : vector<8x128xf32> to vector<8x32xf32>
      %43 = math.tanh %42 : vector<8x32xf32>
      %44 = vector.extract_strided_slice %29 {offsets = [0, 96], sizes = [8, 32], strides = [1, 1]} : vector<8x128xf32> to vector<8x32xf32>
      %45 = arith.negf %44 : vector<8x32xf32>
      %46 = math.exp %45 : vector<8x32xf32>
      %cst_25 = arith.constant 1.000000e+00 : f32
      %47 = vector.broadcast %cst_25 : f32 to vector<8x32xf32>
      %48 = arith.addf %47, %46 : vector<8x32xf32>
      %49 = arith.divf %47, %48 : vector<8x32xf32>
      %50 = arith.mulf %41, %arg11 : vector<8x32xf32>
      %51 = arith.mulf %35, %43 : vector<8x32xf32>
      %52 = arith.addf %50, %51 : vector<8x32xf32>
      %53 = math.tanh %52 : vector<8x32xf32>
      %54 = arith.mulf %49, %53 : vector<8x32xf32>
      %55 = arith.index_cast %25 : i32 to index
      %c0_26 = arith.constant 0 : index
      %56 = vector.load %arg5[%55, %c0_26] : memref<64x32xf32, #tpu.memory_space<vmem>>, vector<8x32xf32>
      tpu.vector_store %arg5[%55, %c0_26], %54 {strides = array<i32>} : memref<64x32xf32, #tpu.memory_space<vmem>>, vector<8x32xf32>,
      scf.yield %54, %52 : vector<8x32xf32>, vector<8x32xf32>
    }
    %c8_i32_13 = arith.constant 8 : i32
    %c0_14 = arith.constant 0 : index
    %c0_15 = arith.constant 0 : index
    %c0_16 = arith.constant 0 : index
    %18 = vector.load %arg6[%c0_14, %c0_15, %c0_16] : memref<1x8x32xf32, #tpu.memory_space<vmem>>, vector<1x8x32xf32>
    %19 = vector.shape_cast %18 : vector<1x8x32xf32> to vector<8x32xf32>
    %20 = vector.shape_cast %17#0 : vector<8x32xf32> to vector<1x8x32xf32>
    tpu.vector_store %arg6[%c0_14, %c0_15, %c0_16], %20 {strides = array<i32>} : memref<1x8x32xf32, #tpu.memory_space<vmem>>, vector<1x8x32xf32>,
    %c0_17 = arith.constant 0 : index
    %c0_18 = arith.constant 0 : index
    %c0_19 = arith.constant 0 : index
    %21 = vector.load %arg7[%c0_17, %c0_18, %c0_19] : memref<1x8x32xf32, #tpu.memory_space<vmem>>, vector<1x8x32xf32>
    %22 = vector.shape_cast %21 : vector<1x8x32xf32> to vector<8x32xf32>
    %23 = vector.shape_cast %17#1 : vector<8x32xf32> to vector<1x8x32xf32>
    tpu.vector_store %arg7[%c0_17, %c0_18, %c0_19], %23 {strides = array<i32>} : memref<1x8x32xf32, #tpu.memory_space<vmem>>, vector<1x8x32xf32>,
    return
  }
  func.func @transform_0(%arg0: i32) -> (i32, i32) {
    %c0_i32 = arith.constant 0 : i32
    %c0_i32_0 = arith.constant 0 : i32
    %c0_i32_1 = arith.constant 0 : i32
    return %c0_i32, %c0_i32_0 : i32, i32
  }
  func.func @transform_1(%arg0: i32) -> (i32, i32, i32) {
    %c0_i32 = arith.constant 0 : i32
    %c0_i32_0 = arith.constant 0 : i32
    %c0_i32_1 = arith.constant 0 : i32
    return %arg0, %c0_i32, %c0_i32_0 : i32, i32, i32
  }
  func.func @transform_2(%arg0: i32) -> (i32, i32, i32) {
    %c0_i32 = arith.constant 0 : i32
    %c0_i32_0 = arith.constant 0 : i32
    %c0_i32_1 = arith.constant 0 : i32
    return %arg0, %c0_i32, %c0_i32_0 : i32, i32, i32
  }
  func.func @transform_3(%arg0: i32) -> (i32, i32, i32) {
    %c0_i32 = arith.constant 0 : i32
    %c0_i32_0 = arith.constant 0 : i32
    %c0_i32_1 = arith.constant 0 : i32
    return %arg0, %c0_i32, %c0_i32_0 : i32, i32, i32
  }
  func.func @transform_4(%arg0: i32) -> (i32, i32) {
    %c0_i32 = arith.constant 0 : i32
    %c0_i32_0 = arith.constant 0 : i32
    %c0_i32_1 = arith.constant 0 : i32
    return %c0_i32, %c0_i32_0 : i32, i32
  }
  func.func @transform_5(%arg0: i32) -> (i32, i32, i32) {
    %c0_i32 = arith.constant 0 : i32
    %c0_i32_0 = arith.constant 0 : i32
    %c0_i32_1 = arith.constant 0 : i32
    return %arg0, %c0_i32, %c0_i32_0 : i32, i32, i32
  }
  func.func @transform_6(%arg0: i32) -> (i32, i32, i32) {
    %c0_i32 = arith.constant 0 : i32
    %c0_i32_0 = arith.constant 0 : i32
    %c0_i32_1 = arith.constant 0 : i32
    return %arg0, %c0_i32, %c0_i32_0 : i32, i32, i32
  }
}

module attributes {stable_mosaic.version = 11 : i64} {
  func.func @lm_head_kernel(%arg0: i32, %arg1: i32, %arg2: memref<16x32xf32, #tpu.memory_space<vmem>>, %arg3: memref<1x32xf32, #tpu.memory_space<vmem>>, %arg4: memref<1x32xf32, #tpu.memory_space<vmem>>, %arg5: memref<32x128xbf16, #tpu.memory_space<vmem>>, %arg6: memref<1x128xf32, #tpu.memory_space<vmem>>, %arg7: memref<16x128xf32, #tpu.memory_space<vmem>>) attributes {dimension_semantics = [#tpu.dimension_semantics<parallel>, #tpu.dimension_semantics<parallel>], iteration_bounds = array<i64: 1, 1>, scalar_prefetch = 0 : i64, scratch_operands = 0 : i64, tpu.core_type = #tpu.core_type<tc>, window_params = [{transform_indices = @transform_0, window_bounds = array<i64: 16, 32>}, {pipeline_mode = #tpu.pipeline_mode<synchronous>, transform_indices = @transform_1, window_bounds = array<i64: 1, 32>}, {pipeline_mode = #tpu.pipeline_mode<synchronous>, transform_indices = @transform_2, window_bounds = array<i64: 1, 32>}, {transform_indices = @transform_3, window_bounds = array<i64: 32, 128>}, {transform_indices = @transform_4, window_bounds = array<i64: 1, 128>}, {transform_indices = @transform_5, window_bounds = array<i64: 16, 128>}]} {
    %c0 = arith.constant 0 : index
    %c0_0 = arith.constant 0 : index
    %0 = vector.load %arg2[%c0, %c0_0] : memref<16x32xf32, #tpu.memory_space<vmem>>, vector<16x32xf32>
    %cst = arith.constant dense<0.000000e+00> : vector<16xf32>
    %1 = vector.multi_reduction <add>, %0, %cst [1] : vector<16x32xf32> to vector<16xf32>
    %2 = vector.shape_cast %1 : vector<16xf32> to vector<16x1xf32>
    %cst_1 = arith.constant 3.200000e+01 : f32
    %3 = vector.broadcast %cst_1 : f32 to vector<16x1xf32>
    %4 = arith.divf %2, %3 : vector<16x1xf32>
    %5 = vector.broadcast %4 : vector<16x1xf32> to vector<16x32xf32>
    %6 = arith.subf %0, %5 : vector<16x32xf32>
    %7 = arith.mulf %6, %6 : vector<16x32xf32>
    %cst_2 = arith.constant dense<0.000000e+00> : vector<16xf32>
    %8 = vector.multi_reduction <add>, %7, %cst_2 [1] : vector<16x32xf32> to vector<16xf32>
    %9 = vector.shape_cast %8 : vector<16xf32> to vector<16x1xf32>
    %cst_3 = arith.constant 3.200000e+01 : f32
    %10 = vector.broadcast %cst_3 : f32 to vector<16x1xf32>
    %11 = arith.divf %9, %10 : vector<16x1xf32>
    %12 = vector.broadcast %4 : vector<16x1xf32> to vector<16x32xf32>
    %13 = arith.subf %0, %12 : vector<16x32xf32>
    %cst_4 = arith.constant 9.99999974E-6 : f32
    %14 = vector.broadcast %cst_4 : f32 to vector<16x1xf32>
    %15 = arith.addf %11, %14 : vector<16x1xf32>
    %16 = math.rsqrt %15 : vector<16x1xf32>
    %17 = vector.broadcast %16 : vector<16x1xf32> to vector<16x32xf32>
    %18 = arith.mulf %13, %17 : vector<16x32xf32>
    %c0_5 = arith.constant 0 : index
    %c0_6 = arith.constant 0 : index
    %19 = vector.load %arg3[%c0_5, %c0_6] : memref<1x32xf32, #tpu.memory_space<vmem>>, vector<1x32xf32>
    %20 = vector.broadcast %19 : vector<1x32xf32> to vector<16x32xf32>
    %21 = arith.mulf %18, %20 : vector<16x32xf32>
    %c0_7 = arith.constant 0 : index
    %c0_8 = arith.constant 0 : index
    %22 = vector.load %arg4[%c0_7, %c0_8] : memref<1x32xf32, #tpu.memory_space<vmem>>, vector<1x32xf32>
    %23 = vector.broadcast %22 : vector<1x32xf32> to vector<16x32xf32>
    %24 = arith.addf %21, %23 : vector<16x32xf32>
    %25 = arith.truncf %24 : vector<16x32xf32> to vector<16x32xbf16>
    %c0_9 = arith.constant 0 : index
    %c0_10 = arith.constant 0 : index
    %26 = vector.load %arg5[%c0_9, %c0_10] : memref<32x128xbf16, #tpu.memory_space<vmem>>, vector<32x128xbf16>
    %cst_11 = arith.constant dense<0.000000e+00> : vector<16x128xf32>
    %27 = tpu.matmul %25, %26, %cst_11 {dimension_numbers = #tpu.dot_dimension_numbers<[1], [0], [0], [1], [0, 0, 1, 1], [], []>} : vector<16x32xbf16>, vector<32x128xbf16>, vector<16x128xf32> -> vector<16x128xf32>
    %c0_12 = arith.constant 0 : index
    %c0_13 = arith.constant 0 : index
    %28 = vector.load %arg6[%c0_12, %c0_13] : memref<1x128xf32, #tpu.memory_space<vmem>>, vector<1x128xf32>
    %29 = vector.broadcast %28 : vector<1x128xf32> to vector<16x128xf32>
    %30 = arith.addf %27, %29 : vector<16x128xf32>
    %c0_14 = arith.constant 0 : index
    %c0_15 = arith.constant 0 : index
    %31 = vector.load %arg7[%c0_14, %c0_15] : memref<16x128xf32, #tpu.memory_space<vmem>>, vector<16x128xf32>
    tpu.vector_store %arg7[%c0_14, %c0_15], %30 {strides = array<i32>} : memref<16x128xf32, #tpu.memory_space<vmem>>, vector<16x128xf32>,
    return
  }
  func.func @transform_0(%arg0: i32, %arg1: i32) -> (i32, i32) {
    %c0_i32 = arith.constant 0 : i32
    %c0_i32_0 = arith.constant 0 : i32
    return %arg0, %c0_i32 : i32, i32
  }
  func.func @transform_1(%arg0: i32, %arg1: i32) -> (i32, i32) {
    %c0_i32 = arith.constant 0 : i32
    %c0_i32_0 = arith.constant 0 : i32
    %c0_i32_1 = arith.constant 0 : i32
    return %c0_i32, %c0_i32_0 : i32, i32
  }
  func.func @transform_2(%arg0: i32, %arg1: i32) -> (i32, i32) {
    %c0_i32 = arith.constant 0 : i32
    %c0_i32_0 = arith.constant 0 : i32
    %c0_i32_1 = arith.constant 0 : i32
    return %c0_i32, %c0_i32_0 : i32, i32
  }
  func.func @transform_3(%arg0: i32, %arg1: i32) -> (i32, i32) {
    %c0_i32 = arith.constant 0 : i32
    %c0_i32_0 = arith.constant 0 : i32
    return %c0_i32, %arg1 : i32, i32
  }
  func.func @transform_4(%arg0: i32, %arg1: i32) -> (i32, i32) {
    %c0_i32 = arith.constant 0 : i32
    %c0_i32_0 = arith.constant 0 : i32
    return %c0_i32, %arg1 : i32, i32
  }
  func.func @transform_5(%arg0: i32, %arg1: i32) -> (i32, i32) {
    %c0_i32 = arith.constant 0 : i32
    return %arg0, %arg1 : i32, i32
  }
}

</mosaic_0001>

<llo_original>
// kernel: language_model_forward.3
$region0: #{language_model_forward.3}
  #allocation0 [shape = 'u32[]', space=smem, size = 0x4, offset = 0x4, fixed_abs, tag = 'smem constant byte address 0x4 - core index']
  #allocation1 [shape = 'u32[72,128]{1,0:T(1,128)}', space=vmem, size = 0x9000, scoped, tag = 'internal scratch']
  %s0 = inlined_call_operand.vmem [shape: f32[16,32], index: 0, kind: input, shape index: {}]
  %s1 = inlined_call_operand.vmem [shape: f32[1,32], index: 1, kind: input, shape index: {}]
  %s2 = inlined_call_operand.vmem [shape: f32[1,32], index: 2, kind: input, shape index: {}]
  %s3 = inlined_call_operand.vmem [shape: bf16[32,128], index: 3, kind: input, shape index: {}]
  %s4 = inlined_call_operand.vmem [shape: f32[1,128], index: 4, kind: input, shape index: {}]
  %s5 = inlined_call_operand.vmem [shape: f32[16,128], index: 5, kind: output, shape index: {}]
  %s6 = sld [smem:[#allocation0]]
  $region30: #{language_model_forward.3} parent=0
    _
  %s8 = ssub.s32 1, %s6
  %s9 = scalar_select 0, %s8, %s6
  // Predicated region
  $region2: #{language_model_forward.3} parent=0 // pred_check
    _
  $region3: #{language_model_forward.3} parent=0 // pred_check_branch
    %11 = sbr.rel (0) target = $region5
  $region4: #{language_model_forward.3} parent=0 // pred_region
    _
  $region5: #{language_model_forward.3} parent=0 // pred_fallthru
    _
  // Predicated region
  $region6: #{language_model_forward.3} parent=0 // pred_check
    _
  $region7: #{language_model_forward.3} parent=0 // pred_check_branch
    %13 = sbr.rel (0) target = $region9
  $region8: #{language_model_forward.3} parent=0 // pred_region
    _
  $region9: #{language_model_forward.3} parent=0 // pred_fallthru
    _
  // Predicated region
  $region10: #{language_model_forward.3} parent=0 // pred_check
    _
  $region11: #{language_model_forward.3} parent=0 // pred_check_branch
    %15 = sbr.rel (0) target = $region13
  $region12: #{language_model_forward.3} parent=0 // pred_region
    _
  $region13: #{language_model_forward.3} parent=0 // pred_fallthru
    _
  // Predicated region
  $region14: #{language_model_forward.3} parent=0 // pred_check
    _
  $region15: #{language_model_forward.3} parent=0 // pred_check_branch
    %17 = sbr.rel (0) target = $region17
  $region16: #{language_model_forward.3} parent=0 // pred_region
    _
  $region17: #{language_model_forward.3} parent=0 // pred_fallthru
    _
  // Predicated region
  $region18: #{language_model_forward.3} parent=0 // pred_check
    _
  $region19: #{language_model_forward.3} parent=0 // pred_check_branch
    %19 = sbr.rel (0) target = $region21
  $region20: #{language_model_forward.3} parent=0 // pred_region
    _
  $region21: #{language_model_forward.3} parent=0 // pred_fallthru
    _
  %v21 = vld [vmem:[%s0] sm:$0xff]
  %v22 = vld [vmem:[%s0 + $0x8] sm:$0xff]
  %vm23 = vcmask 261120
  %v24 = vsel %vm23, %v21, 0.0
  %25 = vadd.xlane.f32.xlu0 %v24
  %v26 = vpop.xlane.xlu0 %25
  %v27 = vsel %vm23, %v22, 0.0
  %28 = vadd.xlane.f32.xlu0 %v27
  %v29 = vpop.xlane.xlu0 %28
  %v30 = vrcp.pop 32.0
  %v31 = vmul.f32 32.0, %v30
  %v32 = vsub.f32 1.0, %v31
  %v33 = vmul.f32 %v30, %v32
  %v34 = vadd.f32 %v30, %v33
  %vm35 = vweird.f32 %v30
  %v36 = vsel %vm35, %v30, %v34
  %v37 = vmul.f32 %v26, %v36
  %v38 = vmul.f32 %v29, %v36
  %v39 = vsub.f32 %v21, %v37
  %v40 = vsub.f32 %v22, %v38
  %v41 = vmul.f32 %v39, %v39
  %v42 = vmul.f32 %v40, %v40
  %v43 = vsel %vm23, %v41, 0.0
  %44 = vadd.xlane.f32.xlu0 %v43
  %v45 = vpop.xlane.xlu0 %44
  %v46 = vsel %vm23, %v42, 0.0
  %47 = vadd.xlane.f32.xlu0 %v46
  %v48 = vpop.xlane.xlu0 %47
  %v49 = vmul.f32 %v45, %v36
  %v50 = vmul.f32 %v48, %v36
  %v51 = vadd.f32 %v49, 1e-05
  %v52 = vadd.f32 %v50, 1e-05
  %v53 = vrsqrt.pop %v51
  %v54 = vmul.f32 %v53, %v51
  %v55 = vmul.f32 %v54, %v53
  %v56 = vmul.f32 0.5, %v55
  %v57 = vsub.f32 1.5, %v56
  %v58 = vmul.f32 %v53, %v57
  %vm59 = vweird.f32 %v51
  %vm60 = vweird.f32 %v53
  %vm61 = vmor %vm59, %vm60
  %v62 = vsel %vm61, %v53, %v58
  %v63 = vrsqrt.pop %v52
  %v64 = vmul.f32 %v63, %v52
  %v65 = vmul.f32 %v64, %v63
  %v66 = vmul.f32 0.5, %v65
  %v67 = vsub.f32 1.5, %v66
  %v68 = vmul.f32 %v63, %v67
  %vm69 = vweird.f32 %v52
  %vm70 = vweird.f32 %v63
  %vm71 = vmor %vm69, %vm70
  %v72 = vsel %vm71, %v63, %v68
  %v73 = vmul.f32 %v39, %v62
  %v74 = vmul.f32 %v40, %v72
  %v75 = vld [vmem:[%s1] sm:$0x1]
  %v77 = vperm.slane %v75, 0
  %v79 = vmul.f32 %v73, %v77
  %v80 = vmul.f32 %v74, %v77
  %v81 = vld [vmem:[%s2] sm:$0x1]
  %v83 = vperm.slane %v81, 0
  %v85 = vadd.f32 %v79, %v83
  %v86 = vadd.f32 %v80, %v83
  %v87 = vpack.c.bf16 %v86, %v85
  %v88 = vld [vmem:[%s3] sm:$0xf]
  %v89 = vld [vmem:[%s3 + $0x4] sm:$0xf]
  %v90 = vld [vmem:[%s3 + $0x8] sm:$0xf]
  %v91 = vld [vmem:[%s3 + $0xc] sm:$0xf]
  %v92 = vld [vmem:[%s4] sm:$0x1]
  %v94 = vperm.slane %v92, 0
  %v100 = vunpack.c.l.b16 %v88
  %v101 = vunpack.c.l.b16 %v89
  %v102 = vunpack.c.l.b16 %v90
  %v103 = vunpack.c.l.b16 %v91
  %v104 = vpack.c.b16 %v101, %v100
  %v105 = vpack.c.b16 %v103, %v102
  %v109 = vsel %vm23, %v87, 0
  %111 = vmatpush.bf16.msra.mxu0 0
  %112 = vmatpush.bf16.msra.mxu0 0
  %113 = vmatpush.bf16.msra.mxu0 0
  %114 = vmatpush.bf16.msra.mxu0 0
  %115 = vmatpush.bf16.msra.mxu0 0
  %116 = vmatpush.bf16.msra.mxu0 0
  %117 = vmatpush.bf16.msra.mxu0 %v105
  %118 = vmatpush.bf16.msra.mxu0 %v104
  %119 = vmatmul.bf16.gmra.mxu0 %v109
  %v120 = vpop.f32.mrf.mxu0
  %v121 = vadd.f32 %v94, %v120
  %v122 = vpop.f32.mrf.mxu0
  %v123 = vadd.f32 %v94, %v122
  %124 = vdwg.mxu0
  %125 = vst [vmem:[%s5] sm:$0xff] %v121
  %126 = vst [vmem:[%s5 + $0x8] sm:$0xff] %v123
  // Predicated region
  $region22: #{language_model_forward.3} parent=0 // pred_check
    _
  $region23: #{language_model_forward.3} parent=0 // pred_check_branch
    %128 = sbr.rel (0) target = $region25
  $region24: #{language_model_forward.3} parent=0 // pred_region
    _
  $region25: #{language_model_forward.3} parent=0 // pred_fallthru
    _
  // Predicated region
  $region26: #{language_model_forward.3} parent=0 // pred_check
    _
  $region27: #{language_model_forward.3} parent=0 // pred_check_branch
    %130 = sbr.rel (0) target = $region29
  $region28: #{language_model_forward.3} parent=0 // pred_region
    _
  $region29: #{language_model_forward.3} parent=0 // pred_fallthru
    _

// kernel: language_model_forward.2
$region0: #{language_model_forward.2}
  #allocation0 [shape = 'u32[]', space=smem, size = 0x4, offset = 0x4, fixed_abs, tag = 'smem constant byte address 0x4 - core index']
  #allocation1 [shape = 'u32[72,128]{1,0:T(1,128)}', space=vmem, size = 0x9000, scoped, tag = 'internal scratch']
  #allocation2 [shape = 'f32[64,128]{1,0:T(8,128)}', space=vmem, size = 0x8000, scoped, tag = 'scratch operand']
  %s0 = inlined_call_operand.vmem [shape: f32[64,32], index: 0, kind: input, shape index: {}]
  %s1 = inlined_call_operand.vmem [shape: bf16[2,32,128], index: 1, kind: input, shape index: {}]
  %s2 = inlined_call_operand.vmem [shape: bf16[2,32,128], index: 2, kind: input, shape index: {}]
  %s3 = inlined_call_operand.vmem [shape: f32[2,1,128], index: 3, kind: input, shape index: {}]
  %s4 = inlined_call_operand.vmem [shape: f32[64,32], index: 4, kind: output, shape index: {0}]
  %s5 = inlined_call_operand.vmem [shape: f32[2,8,32], index: 5, kind: output, shape index: {1}]
  %s6 = inlined_call_operand.vmem [shape: f32[2,8,32], index: 6, kind: output, shape index: {2}]
  %7 = xla_tuple %s4, %s5, %s6
  %s8 = sld [smem:[#allocation0]]
  $region80: #{language_model_forward.2} parent=0
    _
  %s10 = ssub.s32 1, %s8
  %s11 = scalar_select 0, %s10, %s8
  loop: start=0, step=1, limit=4
  $region2: #{language_model_forward.2} parent=0 // loop_pre_header
    _
  $region3: #{language_model_forward.2} parent=0 // loop_header
    %s13 = sphi 0, %s17
    %p14 = scmp.ge.s32.totalorder %s13, 4
    %s21 = sphi 0, %s21
    %s23 = sphi 0, %s21
    %s24 = sphi 0, %s23
    %s38 = sphi 0, %s24
    %s44 = sphi 0, %s46
    %s47 = sphi 0, %s44
    %s48 = sphi 0, %s47
    %s64 = sphi 0, %s48
    %s70 = sphi 0, %s72
    %s73 = sphi 0, %s70
    %s74 = sphi 0, %s73
    %s90 = sphi 0, %s74
    %s96 = sphi 0, %s98
    %s99 = sphi 0, %s96
    %s100 = sphi 0, %s99
    %s116 = sphi 0, %s100
    %s120 = sphi 0, %s120
    %s122 = sphi 0, %s120
    %s123 = sphi 0, %s122
    %s137 = sphi 0, %s123
    %s143 = sphi 0, %s145
    %s146 = sphi 0, %s143
    %s147 = sphi 0, %s146
    %s163 = sphi 0, %s147
    %s169 = sphi 0, %s171
    %s172 = sphi 0, %s169
    %s173 = sphi 0, %s172
    %s189 = sphi 0, %s173
  $region4: #{language_model_forward.2} parent=0 // loop_header_branch
    %16 = sbr.rel (%p14) target = $region8
  $region5: #{language_model_forward.2} parent=0 // loop_body
    %s18 = ssub.s32 %s13, 1
    %s19 = ssub.s32 %s13, 2
    %s20 = sadd.s32 %s13, 1
    %s22 = sadd.s32 %s21, 1
    %p25 = scmp.eq.s32.totalorder %s13, 1
    %p26 = scmp.ne.s32.totalorder %s21, %s23
    %p27 = scmp.eq.s32.totalorder %s13, 0
    %p28 = por %p26, %p27
    %p29 = scmp.ne.s32.totalorder %s21, %s23
    %p30 = scmp.eq.s32.totalorder %s18, 1
    %p31 = por %p29, %p30
    %p32 = scmp.ne.s32.totalorder %s23, %s24
    %p33 = scmp.eq.s32.totalorder %s18, 0
    %p34 = por %p32, %p33
    %p35 = scmp.ne.s32.totalorder %s23, %s24
    %p36 = scmp.eq.s32.totalorder %s19, 1
    %p37 = por %p35, %p36
    %p39 = scmp.ne.s32.totalorder %s24, %s38
    %p40 = scmp.eq.s32.totalorder %s19, 0
    %p41 = por %p39, %p40
    %s42 = ssub.s32 %s13, %s20
    %p43 = scmp.eq.s32.totalorder %s42, 0
    %s45 = sadd.s32 %s44, 1
    %s46 = scalar_select %p43, %s44, %s45
    %p49 = pneg %p43
    %p50 = scmp.eq.s32.totalorder %s13, 1
    %p51 = por %p49, %p50
    %p52 = scmp.ne.s32.totalorder %s44, %s47
    %p53 = scmp.eq.s32.totalorder %s13, 0
    %p54 = por %p52, %p53
    %p55 = scmp.ne.s32.totalorder %s44, %s47
    %p56 = scmp.eq.s32.totalorder %s18, 1
    %p57 = por %p55, %p56
    %p58 = scmp.ne.s32.totalorder %s47, %s48
    %p59 = scmp.eq.s32.totalorder %s18, 0
    %p60 = por %p58, %p59
    %p61 = scmp.ne.s32.totalorder %s47, %s48
    %p62 = scmp.eq.s32.totalorder %s19, 1
    %p63 = por %p61, %p62
    %p65 = scmp.ne.s32.totalorder %s48, %s64
    %p66 = scmp.eq.s32.totalorder %s19, 0
    %p67 = por %p65, %p66
    %s68 = ssub.s32 %s13, %s20
    %p69 = scmp.eq.s32.totalorder %s68, 0
    %s71 = sadd.s32 %s70, 1
    %s72 = scalar_select %p69, %s70, %s71
    %p75 = pneg %p69
    %p76 = scmp.eq.s32.totalorder %s13, 1
    %p77 = por %p75, %p76
    %p78 = scmp.ne.s32.totalorder %s70, %s73
    %p79 = scmp.eq.s32.totalorder %s13, 0
    %p80 = por %p78, %p79
    %p81 = scmp.ne.s32.totalorder %s70, %s73
    %p82 = scmp.eq.s32.totalorder %s18, 1
    %p83 = por %p81, %p82
    %p84 = scmp.ne.s32.totalorder %s73, %s74
    %p85 = scmp.eq.s32.totalorder %s18, 0
    %p86 = por %p84, %p85
    %p87 = scmp.ne.s32.totalorder %s73, %s74
    %p88 = scmp.eq.s32.totalorder %s19, 1
    %p89 = por %p87, %p88
    %p91 = scmp.ne.s32.totalorder %s74, %s90
    %p92 = scmp.eq.s32.totalorder %s19, 0
    %p93 = por %p91, %p92
    %s94 = ssub.s32 %s13, %s20
    %p95 = scmp.eq.s32.totalorder %s94, 0
    %s97 = sadd.s32 %s96, 1
    %s98 = scalar_select %p95, %s96, %s97
    %p101 = pneg %p95
    %p102 = scmp.eq.s32.totalorder %s13, 1
    %p103 = por %p101, %p102
    %p104 = scmp.ne.s32.totalorder %s96, %s99
    %p105 = scmp.eq.s32.totalorder %s13, 0
    %p106 = por %p104, %p105
    %p107 = scmp.ne.s32.totalorder %s96, %s99
    %p108 = scmp.eq.s32.totalorder %s18, 1
    %p109 = por %p107, %p108
    %p110 = scmp.ne.s32.totalorder %s99, %s100
    %p111 = scmp.eq.s32.totalorder %s18, 0
    %p112 = por %p110, %p111
    %p113 = scmp.ne.s32.totalorder %s99, %s100
    %p114 = scmp.eq.s32.totalorder %s19, 1
    %p115 = por %p113, %p114
    %p117 = scmp.ne.s32.totalorder %s100, %s116
    %p118 = scmp.eq.s32.totalorder %s19, 0
    %p119 = por %p117, %p118
    %s121 = sadd.s32 %s120, 1
    %p124 = scmp.eq.s32.totalorder %s13, 1
    %p125 = scmp.ne.s32.totalorder %s120, %s122
    %p126 = scmp.eq.s32.totalorder %s13, 0
    %p127 = por %p125, %p126
    %p128 = scmp.ne.s32.totalorder %s120, %s122
    %p129 = scmp.eq.s32.totalorder %s18, 1
    %p130 = por %p128, %p129
    %p131 = scmp.ne.s32.totalorder %s122, %s123
    %p132 = scmp.eq.s32.totalorder %s18, 0
    %p133 = por %p131, %p132
    %p134 = scmp.ne.s32.totalorder %s122, %s123
    %p135 = scmp.eq.s32.totalorder %s19, 1
    %p136 = por %p134, %p135
    %p138 = scmp.ne.s32.totalorder %s123, %s137
    %p139 = scmp.eq.s32.totalorder %s19, 0
    %p140 = por %p138, %p139
    %s141 = ssub.s32 %s13, %s20
    %p142 = scmp.eq.s32.totalorder %s141, 0
    %s144 = sadd.s32 %s143, 1
    %s145 = scalar_select %p142, %s143, %s144
    %p148 = pneg %p142
    %p149 = scmp.eq.s32.totalorder %s13, 1
    %p150 = por %p148, %p149
    %p151 = scmp.ne.s32.totalorder %s143, %s146
    %p152 = scmp.eq.s32.totalorder %s13, 0
    %p153 = por %p151, %p152
    %p154 = scmp.ne.s32.totalorder %s143, %s146
    %p155 = scmp.eq.s32.totalorder %s18, 1
    %p156 = por %p154, %p155
    %p157 = scmp.ne.s32.totalorder %s146, %s147
    %p158 = scmp.eq.s32.totalorder %s18, 0
    %p159 = por %p157, %p158
    %p160 = scmp.ne.s32.totalorder %s146, %s147
    %p161 = scmp.eq.s32.totalorder %s19, 1
    %p162 = por %p160, %p161
    %p164 = scmp.ne.s32.totalorder %s147, %s163
    %p165 = scmp.eq.s32.totalorder %s19, 0
    %p166 = por %p164, %p165
    %s167 = ssub.s32 %s13, %s20
    %p168 = scmp.eq.s32.totalorder %s167, 0
    %s170 = sadd.s32 %s169, 1
    %s171 = scalar_select %p168, %s169, %s170
    %p174 = pneg %p168
    %p175 = scmp.eq.s32.totalorder %s13, 1
    %p176 = por %p174, %p175
    %p177 = scmp.ne.s32.totalorder %s169, %s172
    %p178 = scmp.eq.s32.totalorder %s13, 0
    %p179 = por %p177, %p178
    %p180 = scmp.ne.s32.totalorder %s169, %s172
    %p181 = scmp.eq.s32.totalorder %s18, 1
    %p182 = por %p180, %p181
    %p183 = scmp.ne.s32.totalorder %s172, %s173
    %p184 = scmp.eq.s32.totalorder %s18, 0
    %p185 = por %p183, %p184
    %p186 = scmp.ne.s32.totalorder %s172, %s173
    %p187 = scmp.eq.s32.totalorder %s19, 1
    %p188 = por %p186, %p187
    %p190 = scmp.ne.s32.totalorder %s173, %s189
    %p191 = scmp.eq.s32.totalorder %s19, 0
    %p192 = por %p190, %p191
    %p193 = scmp.le.s32.totalorder 1, %s13
    %p194 = scmp.lt.s32.totalorder %s13, 3
    %p195 = pnand %p193, %p194
    %p196 = pneg %p195
    // Predicated region
    $region9: #{language_model_forward.2} parent=5 // pred_check
      _
    $region10: #{language_model_forward.2} parent=5 // pred_check_branch
      %198 = sbr.rel (%p195) target = $region12
    $region11: #{language_model_forward.2} parent=5 // pred_region
      %s199 = ssub.s32 %s13, 1
      // Predicated region
      $region13: #{language_model_forward.2} parent=11 // pred_check
        %p200 = pneg %p34
      $region14: #{language_model_forward.2} parent=11 // pred_check_branch
        %202 = sbr.rel (%p200) target = $region16
      $region15: #{language_model_forward.2} parent=11 // pred_region
        _
      $region16: #{language_model_forward.2} parent=11 // pred_fallthru
        _
    $region12: #{language_model_forward.2} parent=5 // pred_fallthru
      _
    %p203 = scmp.lt.s32.totalorder %s13, 2
    // Predicated region
    $region17: #{language_model_forward.2} parent=5 // pred_check
      %p204 = pneg %p203
    $region18: #{language_model_forward.2} parent=5 // pred_check_branch
      %206 = sbr.rel (%p204) target = $region20
    $region19: #{language_model_forward.2} parent=5 // pred_region
      // Predicated region
      $region21: #{language_model_forward.2} parent=19 // pred_check
        %p207 = pneg %p54
      $region22: #{language_model_forward.2} parent=19 // pred_check_branch
        %209 = sbr.rel (%p207) target = $region24
      $region23: #{language_model_forward.2} parent=19 // pred_region
        %p210 = scmp.lt.s32.totalorder %s13, 1
        %s211 = scalar_select %p210, %s13, 1
        %s212 = smul.addr %s211, 4
        %s213 = smul.addr %s212, 4
        %s214 = scalar_lea.vmem %s1, %s213
      $region24: #{language_model_forward.2} parent=19 // pred_fallthru
        _
      // Predicated region
      $region25: #{language_model_forward.2} parent=19 // pred_check
        %p215 = pneg %p80
      $region26: #{language_model_forward.2} parent=19 // pred_check_branch
        %217 = sbr.rel (%p215) target = $region28
      $region27: #{language_model_forward.2} parent=19 // pred_region
        %p218 = scmp.lt.s32.totalorder %s13, 1
        %s219 = scalar_select %p218, %s13, 1
        %s220 = smul.addr %s219, 4
        %s221 = smul.addr %s220, 4
        %s222 = scalar_lea.vmem %s2, %s221
      $region28: #{language_model_forward.2} parent=19 // pred_fallthru
        _
      // Predicated region
      $region29: #{language_model_forward.2} parent=19 // pred_check
        %p223 = pneg %p106
      $region30: #{language_model_forward.2} parent=19 // pred_check_branch
        %225 = sbr.rel (%p223) target = $region32
      $region31: #{language_model_forward.2} parent=19 // pred_region
        %p226 = scmp.lt.s32.totalorder %s13, 1
        %s227 = scalar_select %p226, %s13, 1
        %s228 = scalar_lea.vmem %s3, %s227
      $region32: #{language_model_forward.2} parent=19 // pred_fallthru
        _
    $region20: #{language_model_forward.2} parent=5 // pred_fallthru
      _
    %p229 = scmp.le.s32.totalorder 1, %s13
    %p230 = scmp.lt.s32.totalorder %s13, 3
    %p231 = pnand %p229, %p230
    %p232 = pneg %p231
    // Predicated region
    $region33: #{language_model_forward.2} parent=5 // pred_check
      _
    $region34: #{language_model_forward.2} parent=5 // pred_check_branch
      %234 = sbr.rel (%p231) target = $region36
    $region35: #{language_model_forward.2} parent=5 // pred_region
      %s235 = ssub.s32 %s13, 1
      %p236 = pneg %p34
      %p237 = pneg %p31
      %p238 = scmp.lt.s32.totalorder %s18, 1
      %s239 = scalar_select %p238, %s18, 1
      %s240 = smul.addr %s239, 4
      %s241 = smul.addr %s240, 4
      %s242 = scalar_lea.vmem %s1, %s241
      %p243 = pneg %p60
      %p244 = pneg %p57
      %p245 = scmp.lt.s32.totalorder %s18, 1
      %s246 = scalar_select %p245, %s18, 1
      %s247 = smul.addr %s246, 4
      %s248 = smul.addr %s247, 4
      %s249 = scalar_lea.vmem %s2, %s248
      %p250 = pneg %p86
      %p251 = pneg %p83
      %p252 = scmp.lt.s32.totalorder %s18, 1
      %s253 = scalar_select %p252, %s18, 1
      %s254 = scalar_lea.vmem %s3, %s253
      %p255 = pneg %p112
      %p256 = pneg %p109
      %p257 = pneg %p133
      %p258 = pneg %p130
      %p259 = pneg %p159
      %p260 = pneg %p156
      %p261 = scmp.lt.s32.totalorder %s18, 1
      %s262 = scalar_select %p261, %s18, 1
      %s263 = smul.addr %s262, 8
      %s264 = scalar_lea.vmem %s5, %s263
      %p265 = pneg %p185
      %p266 = pneg %p182
      %p267 = scmp.lt.s32.totalorder %s18, 1
      %s268 = scalar_select %p267, %s18, 1
      %s269 = smul.addr %s268, 8
      %s270 = scalar_lea.vmem %s6, %s269
      %p271 = scmp.lt.s32.totalorder %s18, 1
      %s272 = scalar_select %p271, %s18, 1
      %s273 = smul.addr %s272, 4
      %s274 = smul.addr %s273, 4
      %s275 = scalar_lea.vmem %s1, %s274
      %p276 = scmp.lt.s32.totalorder %s18, 1
      %s277 = scalar_select %p276, %s18, 1
      %s278 = smul.addr %s277, 4
      %s279 = smul.addr %s278, 4
      %s280 = scalar_lea.vmem %s2, %s279
      %p281 = scmp.lt.s32.totalorder %s18, 1
      %s282 = scalar_select %p281, %s18, 1
      %s283 = scalar_lea.vmem %s3, %s282
      %p284 = scmp.lt.s32.totalorder %s18, 1
      %s285 = scalar_select %p284, %s18, 1
      %s286 = smul.addr %s285, 8
      %s287 = scalar_lea.vmem %s5, %s286
      %p288 = scmp.lt.s32.totalorder %s18, 1
      %s289 = scalar_select %p288, %s18, 1
      %s290 = smul.addr %s289, 8
      %s291 = scalar_lea.vmem %s6, %s290
      %v292 = vld [vmem:[%s275] sm:$0xf]
      %v293 = vld [vmem:[%s275 + $0x4] sm:$0xf]
      %v294 = vld [vmem:[%s275 + $0x8] sm:$0xf]
      %v295 = vld [vmem:[%s275 + $0xc] sm:$0xf]
      %v296 = vunpack.c.l.bf16 %v292
      %v297 = vunpack.c.l.bf16 %v293
      %v298 = vunpack.c.l.bf16 %v294
      %v299 = vunpack.c.l.bf16 %v295
      %v300 = vld [vmem:[%s280] sm:$0xf]
      %v301 = vld [vmem:[%s280 + $0x4] sm:$0xf]
      %v302 = vld [vmem:[%s280 + $0x8] sm:$0xf]
      %v303 = vld [vmem:[%s280 + $0xc] sm:$0xf]
      %v304 = vunpack.c.l.bf16 %v300
      %v305 = vunpack.c.l.bf16 %v301
      %v306 = vunpack.c.l.bf16 %v302
      %v307 = vunpack.c.l.bf16 %v303
      %v308 = vld [vmem:[%s283] sm:$0x1]
      %p309 = scmp.eq.s32.totalorder %s18, 0
      // Predicated region
      $region37: #{language_model_forward.2} parent=35 // pred_check
        %p310 = pneg %p309
      $region38: #{language_model_forward.2} parent=35 // pred_check_branch
        %312 = sbr.rel (%p310) target = $region40
      $region39: #{language_model_forward.2} parent=35 // pred_region
        %v313 = vld [vmem:[%s0] sm:$0xff]
        %v314 = vld [vmem:[%s0 + $0x8] sm:$0xff]
        %v315 = vld [vmem:[%s0 + $0x10] sm:$0xff]
        %v316 = vld [vmem:[%s0 + $0x18] sm:$0xff]
        %v317 = vld [vmem:[%s0 + $0x20] sm:$0xff]
        %v318 = vld [vmem:[%s0 + $0x28] sm:$0xff]
        %v319 = vld [vmem:[%s0 + $0x30] sm:$0xff]
        %v320 = vld [vmem:[%s0 + $0x38] sm:$0xff]
        %v322 = vperm.slane %v308, 0
        %vm324 = vcmask 261120
        %v326 = vsel %vm324, %v313, 0
        %v329 = vsel %vm324, %v314, 0
        %v332 = vsel %vm324, %v315, 0
        %v335 = vsel %vm324, %v316, 0
        %v338 = vsel %vm324, %v317, 0
        %v341 = vsel %vm324, %v318, 0
        %v344 = vsel %vm324, %v319, 0
        %v347 = vsel %vm324, %v320, 0
        %349 = vmatpush.msra.mxu0 0.0
        %350 = vmatpush.msra.mxu0 0.0
        %351 = vmatpush.msra.mxu0 0.0
        %352 = vmatpush.msra.mxu0 0.0
        %353 = vmatpush.msra.mxu0 0.0
        %354 = vmatpush.msra.mxu0 0.0
        %355 = vmatpush.msra.mxu0 0.0
        %356 = vmatpush.msra.mxu0 0.0
        %357 = vmatpush.msra.mxu0 0.0
        %358 = vmatpush.msra.mxu0 0.0
        %359 = vmatpush.msra.mxu0 0.0
        %360 = vmatpush.msra.mxu0 0.0
        %361 = vmatpush.msra.mxu0 %v299
        %362 = vmatpush.msra.mxu0 %v298
        %363 = vmatpush.msra.mxu0 %v297
        %364 = vmatpush.msra.mxu0 %v296
        %365 = vmatmul.f32.gmra.mxu0 %v326
        %v366 = vpop.f32.mrf.mxu0
        %v367 = vadd.f32 %v322, %v366
        %368 = vmatmul.f32.gmra.mxu0 %v329
        %v369 = vpop.f32.mrf.mxu0
        %v370 = vadd.f32 %v322, %v369
        %371 = vmatmul.f32.gmra.mxu0 %v332
        %v372 = vpop.f32.mrf.mxu0
        %v373 = vadd.f32 %v322, %v372
        %374 = vmatmul.f32.gmra.mxu0 %v335
        %v375 = vpop.f32.mrf.mxu0
        %v376 = vadd.f32 %v322, %v375
        %377 = vmatmul.f32.gmra.mxu0 %v338
        %v378 = vpop.f32.mrf.mxu0
        %v379 = vadd.f32 %v322, %v378
        %380 = vmatmul.f32.gmra.mxu0 %v341
        %v381 = vpop.f32.mrf.mxu0
        %v382 = vadd.f32 %v322, %v381
        %383 = vmatmul.f32.gmra.mxu0 %v344
        %v384 = vpop.f32.mrf.mxu0
        %v385 = vadd.f32 %v322, %v384
        %386 = vmatmul.f32.gmra.mxu0 %v347
        %v387 = vpop.f32.mrf.mxu0
        %v388 = vadd.f32 %v322, %v387
        %389 = vdwg.mxu0
        %390 = vst [vmem:[#allocation2] sm:$0xff] %v367
        %391 = vst [vmem:[#allocation2 + $0x8] sm:$0xff] %v370
        %392 = vst [vmem:[#allocation2 + $0x10] sm:$0xff] %v373
        %393 = vst [vmem:[#allocation2 + $0x18] sm:$0xff] %v376
        %394 = vst [vmem:[#allocation2 + $0x20] sm:$0xff] %v379
        %395 = vst [vmem:[#allocation2 + $0x28] sm:$0xff] %v382
        %396 = vst [vmem:[#allocation2 + $0x30] sm:$0xff] %v385
        %397 = vst [vmem:[#allocation2 + $0x38] sm:$0xff] %v388
      $region40: #{language_model_forward.2} parent=35 // pred_fallthru
        _
      %p398 = scmp.gt.s32.totalorder %s18, 0
      // Predicated region
      $region41: #{language_model_forward.2} parent=35 // pred_check
        %p399 = pneg %p398
      $region42: #{language_model_forward.2} parent=35 // pred_check_branch
        %401 = sbr.rel (%p399) target = $region44
      $region43: #{language_model_forward.2} parent=35 // pred_region
        %v402 = vld [vmem:[%s4] sm:$0xff]
        %v403 = vld [vmem:[%s4 + $0x8] sm:$0xff]
        %v404 = vld [vmem:[%s4 + $0x10] sm:$0xff]
        %v405 = vld [vmem:[%s4 + $0x18] sm:$0xff]
        %v406 = vld [vmem:[%s4 + $0x20] sm:$0xff]
        %v407 = vld [vmem:[%s4 + $0x28] sm:$0xff]
        %v408 = vld [vmem:[%s4 + $0x30] sm:$0xff]
        %v409 = vld [vmem:[%s4 + $0x38] sm:$0xff]
        %v411 = vperm.slane %v308, 0
        %vm413 = vcmask 261120
        %v415 = vsel %vm413, %v402, 0
        %v418 = vsel %vm413, %v403, 0
        %v421 = vsel %vm413, %v404, 0
        %v424 = vsel %vm413, %v405, 0
        %v427 = vsel %vm413, %v406, 0
        %v430 = vsel %vm413, %v407, 0
        %v433 = vsel %vm413, %v408, 0
        %v436 = vsel %vm413, %v409, 0
        %438 = vmatpush.msra.mxu0 0.0
        %439 = vmatpush.msra.mxu0 0.0
        %440 = vmatpush.msra.mxu0 0.0
        %441 = vmatpush.msra.mxu0 0.0
        %442 = vmatpush.msra.mxu0 0.0
        %443 = vmatpush.msra.mxu0 0.0
        %444 = vmatpush.msra.mxu0 0.0
        %445 = vmatpush.msra.mxu0 0.0
        %446 = vmatpush.msra.mxu0 0.0
        %447 = vmatpush.msra.mxu0 0.0
        %448 = vmatpush.msra.mxu0 0.0
        %449 = vmatpush.msra.mxu0 0.0
        %450 = vmatpush.msra.mxu0 %v299
        %451 = vmatpush.msra.mxu0 %v298
        %452 = vmatpush.msra.mxu0 %v297
        %453 = vmatpush.msra.mxu0 %v296
        %454 = vmatmul.f32.gmra.mxu0 %v415
        %v455 = vpop.f32.mrf.mxu0
        %v456 = vadd.f32 %v411, %v455
        %457 = vmatmul.f32.gmra.mxu0 %v418
        %v458 = vpop.f32.mrf.mxu0
        %v459 = vadd.f32 %v411, %v458
        %460 = vmatmul.f32.gmra.mxu0 %v421
        %v461 = vpop.f32.mrf.mxu0
        %v462 = vadd.f32 %v411, %v461
        %463 = vmatmul.f32.gmra.mxu0 %v424
        %v464 = vpop.f32.mrf.mxu0
        %v465 = vadd.f32 %v411, %v464
        %466 = vmatmul.f32.gmra.mxu0 %v427
        %v467 = vpop.f32.mrf.mxu0
        %v468 = vadd.f32 %v411, %v467
        %469 = vmatmul.f32.gmra.mxu0 %v430
        %v470 = vpop.f32.mrf.mxu0
        %v471 = vadd.f32 %v411, %v470
        %472 = vmatmul.f32.gmra.mxu0 %v433
        %v473 = vpop.f32.mrf.mxu0
        %v474 = vadd.f32 %v411, %v473
        %475 = vmatmul.f32.gmra.mxu0 %v436
        %v476 = vpop.f32.mrf.mxu0
        %v477 = vadd.f32 %v411, %v476
        %478 = vdwg.mxu0
        %479 = vst [vmem:[#allocation2] sm:$0xff] %v456
        %480 = vst [vmem:[#allocation2 + $0x8] sm:$0xff] %v459
        %481 = vst [vmem:[#allocation2 + $0x10] sm:$0xff] %v462
        %482 = vst [vmem:[#allocation2 + $0x18] sm:$0xff] %v465
        %483 = vst [vmem:[#allocation2 + $0x20] sm:$0xff] %v468
        %484 = vst [vmem:[#allocation2 + $0x28] sm:$0xff] %v471
        %485 = vst [vmem:[#allocation2 + $0x30] sm:$0xff] %v474
        %486 = vst [vmem:[#allocation2 + $0x38] sm:$0xff] %v477
      $region44: #{language_model_forward.2} parent=35 // pred_fallthru
        _
      loop: start=0, step=1, limit=8
      $region45: #{language_model_forward.2} parent=35 // loop_pre_header
        _
      $region46: #{language_model_forward.2} parent=35 // loop_header
        %s488 = sphi 0, %s492
        %p489 = scmp.ge.s32.totalorder %s488, 8
        %v493 = vphi 0.0, %v561
        %v494 = vphi 0.0, %v555
      $region47: #{language_model_forward.2} parent=35 // loop_header_branch
        %491 = sbr.rel (%p489) target = $region51
      $region48: #{language_model_forward.2} parent=35 // loop_body
        %s495 = smul.u32 %s488, 8
        %s496 = scalar_lea.vmem [#allocation2], %s495
        %v497 = vld [vmem:[%s496] sm:$0xff]
        %499 = vrot.lane.b32.xlu0 %v493, 32
        %v500 = vpop.permute.xlu0 %499
        %vm501 = vcmask 261120
        %v502 = vsel %vm501, %v500, 0
        %504 = vmatpush.msra.mxu0 0.0
        %505 = vmatpush.msra.mxu0 0.0
        %506 = vmatpush.msra.mxu0 0.0
        %507 = vmatpush.msra.mxu0 0.0
        %508 = vmatpush.msra.mxu0 0.0
        %509 = vmatpush.msra.mxu0 0.0
        %510 = vmatpush.msra.mxu0 0.0
        %511 = vmatpush.msra.mxu0 0.0
        %512 = vmatpush.msra.mxu0 0.0
        %513 = vmatpush.msra.mxu0 0.0
        %514 = vmatpush.msra.mxu0 0.0
        %515 = vmatpush.msra.mxu0 0.0
        %516 = vmatpush.msra.mxu0 %v307
        %517 = vmatpush.msra.mxu0 %v306
        %518 = vmatpush.msra.mxu0 %v305
        %519 = vmatpush.msra.mxu0 %v304
        %520 = vmatmul.f32.gmra.mxu0 %v502
        %v521 = vpop.f32.mrf.mxu0
        %v522 = vadd.f32 0.0, %v521
        %523 = vdwg.mxu0
        %v524 = vadd.f32 %v497, %v522
        %v525 = vxor.u32 %v524, 2147483648
        %v526 = vmul.f32 %v525, 1.442695
        %v527 = vpow.pop %v526
        %v528 = vadd.f32 %v527, 1.0
        %v529 = vrcp.pop %v528
        %v530 = vmul.f32 %v528, %v529
        %v531 = vsub.f32 1.0, %v530
        %v532 = vmul.f32 %v529, %v531
        %v533 = vadd.f32 %v529, %v532
        %vm534 = vweird.f32 %v528
        %vm535 = vweird.f32 %v529
        %vm536 = vmor %vm534, %vm535
        %v537 = vsel %vm536, %v529, %v533
        %v538 = vand.u32 2147483647, %v528
        %vm539 = vcmp.eq.f32.partialorder %v538, 8.507059e+37
        %v540 = vand.u32 %v528, 2147483648
        %v541 = vor.u32 1.1754944e-38, %v540
        %v542 = vsel %vm539, %v541, %v537
        %v543 = vmul.f32 1.0, %v542
        %v544 = vtanh.pop %v524
        %v545 = vmul.f32 %v543, %v494
        %547 = vrot.lane.b32.xlu0 %v544, 64
        %v548 = vpop.permute.xlu0 %547
        %v550 = vmul.f32 %v543, %v548
        %552 = vrot.lane.b32.xlu0 %v550, 32
        %v553 = vpop.permute.xlu0 %552
        %v555 = vadd.f32 %v545, %v553
        %v556 = vtanh.pop %v555
        %558 = vrot.lane.b32.xlu0 %v556, 64
        %v559 = vpop.permute.xlu0 %558
        %v561 = vmul.f32 %v543, %v559
        %563 = vrot.lane.b32.xlu0 %v561, 32
        %v564 = vpop.permute.xlu0 %563
        %s566 = scalar_lea.vmem %s4, %s495
        %567 = vst.msk [vmem:[%s566] sm:$0xff] %vm501, %v564
      $region49: #{language_model_forward.2} parent=35 // loop_footer
        %s492 = sadd.s32 1, %s488
      $region50: #{language_model_forward.2} parent=35 // loop_footer_branch
        %487 = sbr.rel target = $region46
      $region51: #{language_model_forward.2} parent=35 // loop_exit
        _
      %569 = vrot.lane.b32.xlu0 %v493, 32
      %v570 = vpop.permute.xlu0 %569
      %vm572 = vcmask 261120
      %573 = vst.msk [vmem:[%s287] sm:$0xff] %vm572, %v570
      %575 = vrot.lane.b32.xlu0 %v494, 96
      %v576 = vpop.permute.xlu0 %575
      %578 = vst.msk [vmem:[%s291] sm:$0xff] %vm572, %v576
      %p579 = scmp.lt.s32.totalorder %s18, 1
      %s580 = scalar_select %p579, %s18, 1
      %s581 = smul.addr %s580, 8
      %s582 = scalar_lea.vmem %s5, %s581
      %p583 = scmp.lt.s32.totalorder %s18, 1
      %s584 = scalar_select %p583, %s18, 1
      %s585 = smul.addr %s584, 8
      %s586 = scalar_lea.vmem %s6, %s585
      // Predicated region
      $region52: #{language_model_forward.2} parent=35 // pred_check
        %p587 = pneg %p130
      $region53: #{language_model_forward.2} parent=35 // pred_check_branch
        %589 = sbr.rel (%p587) target = $region55
      $region54: #{language_model_forward.2} parent=35 // pred_region
        _
      $region55: #{language_model_forward.2} parent=35 // pred_fallthru
        _
      // Predicated region
      $region56: #{language_model_forward.2} parent=35 // pred_check
        %p590 = pneg %p156
      $region57: #{language_model_forward.2} parent=35 // pred_check_branch
        %592 = sbr.rel (%p590) target = $region59
      $region58: #{language_model_forward.2} parent=35 // pred_region
        _
      $region59: #{language_model_forward.2} parent=35 // pred_fallthru
        _
      // Predicated region
      $region60: #{language_model_forward.2} parent=35 // pred_check
        %p593 = pneg %p182
      $region61: #{language_model_forward.2} parent=35 // pred_check_branch
        %595 = sbr.rel (%p593) target = $region63
      $region62: #{language_model_forward.2} parent=35 // pred_region
        _
      $region63: #{language_model_forward.2} parent=35 // pred_fallthru
        _
      // Predicated region
      $region64: #{language_model_forward.2} parent=35 // pred_check
        %p596 = pneg %p130
      $region65: #{language_model_forward.2} parent=35 // pred_check_branch
        %598 = sbr.rel (%p596) target = $region67
      $region66: #{language_model_forward.2} parent=35 // pred_region
        _
      $region67: #{language_model_forward.2} parent=35 // pred_fallthru
        _
    $region36: #{language_model_forward.2} parent=5 // pred_fallthru
      _
    %p599 = scmp.le.s32.totalorder 2, %s13
    // Predicated region
    $region68: #{language_model_forward.2} parent=5 // pred_check
      %p600 = pneg %p599
    $region69: #{language_model_forward.2} parent=5 // pred_check_branch
      %602 = sbr.rel (%p600) target = $region71
    $region70: #{language_model_forward.2} parent=5 // pred_region
      %s603 = ssub.s32 %s13, 2
      // Predicated region
      $region72: #{language_model_forward.2} parent=70 // pred_check
        %p604 = pneg %p162
      $region73: #{language_model_forward.2} parent=70 // pred_check_branch
        %606 = sbr.rel (%p604) target = $region75
      $region74: #{language_model_forward.2} parent=70 // pred_region
        %p607 = scmp.lt.s32.totalorder %s19, 1
        %s608 = scalar_select %p607, %s19, 1
        %s609 = smul.addr %s608, 8
        %s610 = scalar_lea.vmem %s5, %s609
      $region75: #{language_model_forward.2} parent=70 // pred_fallthru
        _
      // Predicated region
      $region76: #{language_model_forward.2} parent=70 // pred_check
        %p611 = pneg %p188
      $region77: #{language_model_forward.2} parent=70 // pred_check_branch
        %613 = sbr.rel (%p611) target = $region79
      $region78: #{language_model_forward.2} parent=70 // pred_region
        %p614 = scmp.lt.s32.totalorder %s19, 1
        %s615 = scalar_select %p614, %s19, 1
        %s616 = smul.addr %s615, 8
        %s617 = scalar_lea.vmem %s6, %s616
      $region79: #{language_model_forward.2} parent=70 // pred_fallthru
        _
    $region71: #{language_model_forward.2} parent=5 // pred_fallthru
      _
  $region6: #{language_model_forward.2} parent=0 // loop_footer
    %s17 = sadd.s32 1, %s13
  $region7: #{language_model_forward.2} parent=0 // loop_footer_branch
    %12 = sbr.rel target = $region3
  $region8: #{language_model_forward.2} parent=0 // loop_exit
    _

</llo_original>
